<compile_context>
chip_gen: v5e
topology: v5e:2x2
jax: 0.10.0
libtpu: 0.0.40
codegen_flags: <defaults>
</compile_context>

<pallas_src>
import functools
import math

import jax
import jax.numpy as jnp
from jax.experimental import pallas as pl
from jax.experimental.pallas import tpu as pltpu


def _round_up(x, m):
    return ((x + m - 1) // m) * m


def _glu_kernel(x_ref, wv_ref, wg_ref, bv_ref, bg_ref, o_ref,
                accv_ref, accg_ref, *, activation):
    """Grid = (M_blocks, N_blocks, K_blocks); K (reduction) is the last axis."""
    k = pl.program_id(2)

    @pl.when(k == 0)
    def _():
        accv_ref[...] = jnp.zeros_like(accv_ref)
        accg_ref[...] = jnp.zeros_like(accg_ref)

    x = x_ref[...]
    accv_ref[...] += jnp.dot(x, wv_ref[...], preferred_element_type=jnp.float32)
    accg_ref[...] += jnp.dot(x, wg_ref[...], preferred_element_type=jnp.float32)

    @pl.when(k == pl.num_programs(2) - 1)
    def _():
        val = accv_ref[...] + bv_ref[...]
        gate = accg_ref[...] + bg_ref[...]
        o_ref[...] = (val * activation(gate)).astype(o_ref.dtype)


def glu_forward(x, weight, bias, *, activation=jax.nn.silu,
                tile_m=128, tile_n=128, tile_k=512):
    """GLU forward pass.

    x:      (..., dim_in)
    weight: (dim_in, 2 * dim_out)   (PyTorch nn.Linear weight, transposed)
    bias:   (2 * dim_out,)
    Returns (..., dim_out) = val * activation(gate).

    tile_n / tile_k must be multiples of 128 (only used when the corresponding
    dimension exceeds them; otherwise the full dimension is taken as one block).
    """
    orig_lead = x.shape[:-1]
    dim_in = x.shape[-1]
    dim_out = weight.shape[1] // 2
    M = math.prod(orig_lead) if orig_lead else 1
    xf = x.reshape(M, dim_in)

    # Split the projection into value/gate halves here so the kernel output and
    # both matmuls are lane-dense and no in-kernel lane-axis chunk is needed.
    wv, wg = weight[:, :dim_out], weight[:, dim_out:]
    bv = bias[:dim_out].reshape(1, dim_out)
    bg = bias[dim_out:].reshape(1, dim_out)

    # --- tile choice & padding (respect the (8, 128) block constraint) -------
    tm = _round_up(M, 8) if M <= tile_m else tile_m
    Mp = _round_up(M, tm)
    tn = dim_out if dim_out <= tile_n else tile_n
    Np = _round_up(dim_out, tn)
    tk = dim_in if dim_in <= tile_k else tile_k
    Kp = _round_up(dim_in, tk)

    if (Mp, Kp) != (M, dim_in):
        xf = jnp.pad(xf, ((0, Mp - M), (0, Kp - dim_in)))
    if (Kp, Np) != (dim_in, dim_out):
        wv = jnp.pad(wv, ((0, Kp - dim_in), (0, Np - dim_out)))
        wg = jnp.pad(wg, ((0, Kp - dim_in), (0, Np - dim_out)))
        bv = jnp.pad(bv, ((0, 0), (0, Np - dim_out)))
        bg = jnp.pad(bg, ((0, 0), (0, Np - dim_out)))

    grid = (Mp // tm, Np // tn, Kp // tk)
    kernel = functools.partial(_glu_kernel, activation=activation)

    out = pl.pallas_call(
        kernel,
        out_shape=jax.ShapeDtypeStruct((Mp, Np), x.dtype),
        grid_spec=pltpu.PrefetchScalarGridSpec(
            num_scalar_prefetch=0,
            grid=grid,
            in_specs=[
                pl.BlockSpec((tm, tk), lambda i, j, k: (i, k)),   # x
                pl.BlockSpec((tk, tn), lambda i, j, k: (k, j)),   # W_val
                pl.BlockSpec((tk, tn), lambda i, j, k: (k, j)),   # W_gate
                pl.BlockSpec((1, tn), lambda i, j, k: (0, j)),    # b_val
                pl.BlockSpec((1, tn), lambda i, j, k: (0, j)),    # b_gate
            ],
            out_specs=pl.BlockSpec((tm, tn), lambda i, j, k: (i, j)),
            scratch_shapes=[pltpu.VMEM((tm, tn), jnp.float32),
                            pltpu.VMEM((tm, tn), jnp.float32)],
        ),
        compiler_params=pltpu.CompilerParams(
            dimension_semantics=("parallel", "parallel", "arbitrary")),
    )(xf, wv, wg, bv, bg)

    return out[:M, :dim_out].reshape(*orig_lead, dim_out)


def glu_reference(x, weight, bias, *, activation=jax.nn.silu):
    """Pure-JAX reference mirroring the PyTorch forward."""
    proj = x @ weight + bias
    val, gate = jnp.split(proj, 2, axis=-1)
    return val * activation(gate)


if __name__ == "__main__":
    key = jax.random.PRNGKey(0)
    keys = jax.random.split(key, 6)

    # Small case consistent with the module: batch=2, seq=8, dim_in=32, dim_out=64.
    # Activation: SiLU (typical choice passed to GLU in the source model).
    batch, seq, dim_in, dim_out = 2, 8, 32, 64
    x = jax.random.normal(keys[0], (batch, seq, dim_in), jnp.float32)
    w = jax.random.normal(keys[1], (dim_in, 2 * dim_out), jnp.float32) * (dim_in ** -0.5)
    b = jax.random.normal(keys[2], (2 * dim_out,), jnp.float32) * 0.1

    out = jax.block_until_ready(glu_forward(x, w, b, activation=jax.nn.silu))
    ref = glu_reference(x, w, b, activation=jax.nn.silu)
    assert out.shape == (batch, seq, dim_out), out.shape
    assert jnp.allclose(out, ref, atol=1e-5, rtol=1e-5), \
        f"max abs err {float(jnp.max(jnp.abs(out - ref)))}"

    # Larger, non-aligned case exercising the (M, N, K) tiling + padding path.
    M2, K2, N2 = 400, 384, 320
    x2 = jax.random.normal(keys[3], (M2, K2), jnp.float32)
    w2 = jax.random.normal(keys[4], (K2, 2 * N2), jnp.float32) * (K2 ** -0.5)
    b2 = jax.random.normal(keys[5], (2 * N2,), jnp.float32) * 0.1
    out2 = jax.block_until_ready(
        glu_forward(x2, w2, b2, tile_m=128, tile_n=128, tile_k=128))
    ref2 = glu_reference(x2, w2, b2)
    assert out2.shape == (M2, N2), out2.shape
    assert jnp.allclose(out2, ref2, atol=1e-4, rtol=1e-4), \
        f"max abs err {float(jnp.max(jnp.abs(out2 - ref2)))}"

    print("KERNEL_OK")
</pallas_src>

<mosaic_0001>
module attributes {stable_mosaic.version = 11 : i64} {
  func.func @_glu_kernel(%arg0: i32, %arg1: i32, %arg2: i32, %arg3: memref<16x32xf32, #tpu.memory_space<vmem>>, %arg4: memref<32x64xf32, #tpu.memory_space<vmem>>, %arg5: memref<32x64xf32, #tpu.memory_space<vmem>>, %arg6: memref<1x64xf32, #tpu.memory_space<vmem>>, %arg7: memref<1x64xf32, #tpu.memory_space<vmem>>, %arg8: memref<16x64xf32, #tpu.memory_space<vmem>>, %arg9: memref<16x64xf32, #tpu.memory_space<vmem>>, %arg10: memref<16x64xf32, #tpu.memory_space<vmem>>) attributes {dimension_semantics = [#tpu.dimension_semantics<parallel>, #tpu.dimension_semantics<parallel>, #tpu.dimension_semantics<arbitrary>], iteration_bounds = array<i64: 1, 1, 1>, scalar_prefetch = 0 : i64, scratch_operands = 2 : i64, tpu.core_type = #tpu.core_type<tc>, window_params = [{transform_indices = @transform_0, window_bounds = array<i64: 16, 32>}, {transform_indices = @transform_1, window_bounds = array<i64: 32, 64>}, {transform_indices = @transform_2, window_bounds = array<i64: 32, 64>}, {transform_indices = @transform_3, window_bounds = array<i64: 1, 64>}, {transform_indices = @transform_4, window_bounds = array<i64: 1, 64>}, {transform_indices = @transform_5, window_bounds = array<i64: 16, 64>}]} {
    %c0_i32 = arith.constant 0 : i32
    %0 = arith.cmpi eq, %arg2, %c0_i32 : i32
    %1 = arith.extui %0 : i1 to i32
    %c0_i32_0 = arith.constant 0 : i32
    %2 = arith.cmpi ne, %1, %c0_i32_0 : i32
    scf.if %2 {
      %cst_17 = arith.constant 0.000000e+00 : f32
      %17 = vector.broadcast %cst_17 : f32 to vector<16x64xf32>
      %c0_18 = arith.constant 0 : index
      %c0_19 = arith.constant 0 : index
      %18 = vector.load %arg9[%c0_18, %c0_19] : memref<16x64xf32, #tpu.memory_space<vmem>>, vector<16x64xf32>
      tpu.vector_store %arg9[%c0_18, %c0_19], %17 {strides = array<i32>} : memref<16x64xf32, #tpu.memory_space<vmem>>, vector<16x64xf32>,
      %cst_20 = arith.constant 0.000000e+00 : f32
      %19 = vector.broadcast %cst_20 : f32 to vector<16x64xf32>
      %c0_21 = arith.constant 0 : index
      %c0_22 = arith.constant 0 : index
      %20 = vector.load %arg10[%c0_21, %c0_22] : memref<16x64xf32, #tpu.memory_space<vmem>>, vector<16x64xf32>
      tpu.vector_store %arg10[%c0_21, %c0_22], %19 {strides = array<i32>} : memref<16x64xf32, #tpu.memory_space<vmem>>, vector<16x64xf32>,
    } else {
    }
    %c0 = arith.constant 0 : index
    %c0_1 = arith.constant 0 : index
    %3 = vector.load %arg3[%c0, %c0_1] : memref<16x32xf32, #tpu.memory_space<vmem>>, vector<16x32xf32>
    %c0_2 = arith.constant 0 : index
    %c0_3 = arith.constant 0 : index
    %4 = vector.load %arg9[%c0_2, %c0_3] : memref<16x64xf32, #tpu.memory_space<vmem>>, vector<16x64xf32>
    %c0_4 = arith.constant 0 : index
    %c0_5 = arith.constant 0 : index
    %5 = vector.load %arg4[%c0_4, %c0_5] : memref<32x64xf32, #tpu.memory_space<vmem>>, vector<32x64xf32>
    %cst = arith.constant dense<0.000000e+00> : vector<16x64xf32>
    %6 = tpu.matmul %3, %5, %cst {dimension_numbers = #tpu.dot_dimension_numbers<[1], [0], [0], [1], [0, 0, 1, 1], [], []>} : vector<16x32xf32>, vector<32x64xf32>, vector<16x64xf32> -> vector<16x64xf32>
    %7 = arith.addf %4, %6 : vector<16x64xf32>
    %c0_6 = arith.constant 0 : index
    %c0_7 = arith.constant 0 : index
    %8 = vector.load %arg9[%c0_6, %c0_7] : memref<16x64xf32, #tpu.memory_space<vmem>>, vector<16x64xf32>
    tpu.vector_store %arg9[%c0_6, %c0_7], %7 {strides = array<i32>} : memref<16x64xf32, #tpu.memory_space<vmem>>, vector<16x64xf32>,
    %c0_8 = arith.constant 0 : index
    %c0_9 = arith.constant 0 : index
    %9 = vector.load %arg10[%c0_8, %c0_9] : memref<16x64xf32, #tpu.memory_space<vmem>>, vector<16x64xf32>
    %c0_10 = arith.constant 0 : index
    %c0_11 = arith.constant 0 : index
    %10 = vector.load %arg5[%c0_10, %c0_11] : memref<32x64xf32, #tpu.memory_space<vmem>>, vector<32x64xf32>
    %cst_12 = arith.constant dense<0.000000e+00> : vector<16x64xf32>
    %11 = tpu.matmul %3, %10, %cst_12 {dimension_numbers = #tpu.dot_dimension_numbers<[1], [0], [0], [1], [0, 0, 1, 1], [], []>} : vector<16x32xf32>, vector<32x64xf32>, vector<16x64xf32> -> vector<16x64xf32>
    %12 = arith.addf %9, %11 : vector<16x64xf32>
    %c0_13 = arith.constant 0 : index
    %c0_14 = arith.constant 0 : index
    %13 = vector.load %arg10[%c0_13, %c0_14] : memref<16x64xf32, #tpu.memory_space<vmem>>, vector<16x64xf32>
    tpu.vector_store %arg10[%c0_13, %c0_14], %12 {strides = array<i32>} : memref<16x64xf32, #tpu.memory_space<vmem>>, vector<16x64xf32>,
    %c0_i32_15 = arith.constant 0 : i32
    %14 = arith.cmpi eq, %arg2, %c0_i32_15 : i32
    %15 = arith.extui %14 : i1 to i32
    %c0_i32_16 = arith.constant 0 : i32
    %16 = arith.cmpi ne, %15, %c0_i32_16 : i32
    scf.if %16 {
      %c0_17 = arith.constant 0 : index
      %c0_18 = arith.constant 0 : index
      %17 = vector.load %arg9[%c0_17, %c0_18] : memref<16x64xf32, #tpu.memory_space<vmem>>, vector<16x64xf32>
      %c0_19 = arith.constant 0 : index
      %c0_20 = arith.constant 0 : index
      %18 = vector.load %arg6[%c0_19, %c0_20] : memref<1x64xf32, #tpu.memory_space<vmem>>, vector<1x64xf32>
      %19 = vector.broadcast %18 : vector<1x64xf32> to vector<16x64xf32>
      %20 = arith.addf %17, %19 : vector<16x64xf32>
      %c0_21 = arith.constant 0 : index
      %c0_22 = arith.constant 0 : index
      %21 = vector.load %arg10[%c0_21, %c0_22] : memref<16x64xf32, #tpu.memory_space<vmem>>, vector<16x64xf32>
      %c0_23 = arith.constant 0 : index
      %c0_24 = arith.constant 0 : index
      %22 = vector.load %arg7[%c0_23, %c0_24] : memref<1x64xf32, #tpu.memory_space<vmem>>, vector<1x64xf32>
      %23 = vector.broadcast %22 : vector<1x64xf32> to vector<16x64xf32>
      %24 = arith.addf %21, %23 : vector<16x64xf32>
      %25 = arith.negf %24 : vector<16x64xf32>
      %26 = math.exp %25 : vector<16x64xf32>
      %cst_25 = arith.constant 1.000000e+00 : f32
      %27 = vector.broadcast %cst_25 : f32 to vector<16x64xf32>
      %28 = arith.addf %27, %26 : vector<16x64xf32>
      %29 = arith.divf %27, %28 : vector<16x64xf32>
      %30 = arith.mulf %24, %29 : vector<16x64xf32>
      %31 = arith.mulf %20, %30 : vector<16x64xf32>
      %c0_26 = arith.constant 0 : index
      %c0_27 = arith.constant 0 : index
      %32 = vector.load %arg8[%c0_26, %c0_27] : memref<16x64xf32, #tpu.memory_space<vmem>>, vector<16x64xf32>
      tpu.vector_store %arg8[%c0_26, %c0_27], %31 {strides = array<i32>} : memref<16x64xf32, #tpu.memory_space<vmem>>, vector<16x64xf32>,
    } else {
    }
    return
  }
  func.func @transform_0(%arg0: i32, %arg1: i32, %arg2: i32) -> (i32, i32) {
    %c0_i32 = arith.constant 0 : i32
    return %arg0, %arg2 : i32, i32
  }
  func.func @transform_1(%arg0: i32, %arg1: i32, %arg2: i32) -> (i32, i32) {
    %c0_i32 = arith.constant 0 : i32
    return %arg2, %arg1 : i32, i32
  }
  func.func @transform_2(%arg0: i32, %arg1: i32, %arg2: i32) -> (i32, i32) {
    %c0_i32 = arith.constant 0 : i32
    return %arg2, %arg1 : i32, i32
  }
  func.func @transform_3(%arg0: i32, %arg1: i32, %arg2: i32) -> (i32, i32) {
    %c0_i32 = arith.constant 0 : i32
    %c0_i32_0 = arith.constant 0 : i32
    return %c0_i32, %arg1 : i32, i32
  }
  func.func @transform_4(%arg0: i32, %arg1: i32, %arg2: i32) -> (i32, i32) {
    %c0_i32 = arith.constant 0 : i32
    %c0_i32_0 = arith.constant 0 : i32
    return %c0_i32, %arg1 : i32, i32
  }
  func.func @transform_5(%arg0: i32, %arg1: i32, %arg2: i32) -> (i32, i32) {
    %c0_i32 = arith.constant 0 : i32
    return %arg0, %arg1 : i32, i32
  }
}

</mosaic_0001>

<llo_original>
// kernel: tpu_custom_call.1
$region0: #{tpu_custom_call.1}
  #allocation0 [shape = 'u32[]', space=smem, size = 0x4, offset = 0x4, fixed_abs, tag = 'smem constant byte address 0x4 - core index']
  #allocation1 [shape = 'u32[72,128]{1,0:T(1,128)}', space=vmem, size = 0x9000, scoped, tag = 'internal scratch']
  #allocation2 [shape = 'f32[16,64]{1,0:T(8,128)}', space=vmem, size = 0x2000, scoped, tag = 'scratch operand']
  #allocation3 [shape = 'f32[16,64]{1,0:T(8,128)}', space=vmem, size = 0x2000, scoped, tag = 'scratch operand']
  %s0 = inlined_call_operand.hbm [shape: f32[16,32], index: 0, kind: input, shape index: {}]
  %s1 = inlined_call_operand.hbm [shape: f32[32,64], index: 1, kind: input, shape index: {}]
  %s2 = inlined_call_operand.hbm [shape: f32[32,64], index: 2, kind: input, shape index: {}]
  %s3 = inlined_call_operand.vmem [shape: f32[1,64], index: 3, kind: input, shape index: {}]
  %s4 = inlined_call_operand.vmem [shape: f32[1,64], index: 4, kind: input, shape index: {}]
  %s5 = inlined_call_operand.hbm [shape: f32[16,64], index: 5, kind: output, shape index: {}]
  %s6 = sld [smem:[#allocation0]]
  $region50: #{tpu_custom_call.1} parent=0
    _
  %s8 = ssub.s32 1, %s6
  %s9 = scalar_select 0, %s8, %s6
  $region1: #{tpu_custom_call.1} parent=0
    #allocation4 [shape = 'u8[8192]{0}', space=vmem, size = 0x2000, scoped, tag = 'input window, operand 0, single buffered']
    #allocation5 [shape = 's32[1]{0}', space=sflag, size = 0x4, scoped, tag = 'scoped memory for tpu_custom_call.1']
    #allocation6 [shape = 's32[1]{0}', space=sflag, size = 0x4, scoped, tag = 'scoped memory for tpu_custom_call.1']
    #allocation7 [shape = 'u8[16384]{0}', space=vmem, size = 0x4000, scoped, tag = 'input window, operand 1, single buffered']
    #allocation8 [shape = 's32[1]{0}', space=sflag, size = 0x4, scoped, tag = 'scoped memory for tpu_custom_call.1']
    #allocation9 [shape = 'u8[16384]{0}', space=vmem, size = 0x4000, scoped, tag = 'input window, operand 2, single buffered']
    #allocation10 [shape = 'u8[8192]{0}', space=vmem, size = 0x2000, scoped, tag = 'output window, operand 0, single buffered']
    %10 = vsyncpa [#allocation5], 0
    %11 = vsyncpa [#allocation8], 0
    %12 = vsyncpa [#allocation6], 0
    // Predicated region
    $region2: #{tpu_custom_call.1} parent=1 // pred_check
      _
    $region3: #{tpu_custom_call.1} parent=1 // pred_check_branch
      %14 = sbr.rel (0) target = $region5
    $region4: #{tpu_custom_call.1} parent=1 // pred_region
      %16 = vsyncadd [#allocation5], 0
      %s17 = sshll.u32 %s0, 4
      %s18 = int_to_ptr.hbm [resolvable:$true] %s17
      %s19 = sshll.u32 [#allocation4], 4
      %s20 = int_to_ptr.vmem [resolvable:$true] %s19
      %25 = dma.hbm_to_vmem [thread:$0]  %s18, 256, %s20, [#allocation5], 128, 128, 8
    $region5: #{tpu_custom_call.1} parent=1 // pred_fallthru
      _
    // Predicated region
    $region6: #{tpu_custom_call.1} parent=1 // pred_check
      _
    $region7: #{tpu_custom_call.1} parent=1 // pred_check_branch
      %27 = sbr.rel (0) target = $region9
    $region8: #{tpu_custom_call.1} parent=1 // pred_region
      %29 = vsyncadd [#allocation8], 0
      %s30 = sshll.u32 %s1, 4
      %s31 = int_to_ptr.hbm [resolvable:$true] %s30
      %s32 = sshll.u32 [#allocation7], 4
      %s33 = int_to_ptr.vmem [resolvable:$true] %s32
      %38 = dma.hbm_to_vmem [thread:$0]  %s31, 512, %s33, [#allocation8], 128, 128, 8
    $region9: #{tpu_custom_call.1} parent=1 // pred_fallthru
      _
    // Predicated region
    $region10: #{tpu_custom_call.1} parent=1 // pred_check
      _
    $region11: #{tpu_custom_call.1} parent=1 // pred_check_branch
      %40 = sbr.rel (0) target = $region13
    $region12: #{tpu_custom_call.1} parent=1 // pred_region
      %42 = vsyncadd [#allocation8], 0
      %s43 = sshll.u32 %s2, 4
      %s44 = int_to_ptr.hbm [resolvable:$true] %s43
      %s45 = sshll.u32 [#allocation9], 4
      %s46 = int_to_ptr.vmem [resolvable:$true] %s45
      %51 = dma.hbm_to_vmem [thread:$0]  %s44, 512, %s46, [#allocation8], 128, 128, 8
    $region13: #{tpu_custom_call.1} parent=1 // pred_fallthru
      _
    // Predicated region
    $region14: #{tpu_custom_call.1} parent=1 // pred_check
      _
    $region15: #{tpu_custom_call.1} parent=1 // pred_check_branch
      %53 = sbr.rel (0) target = $region17
    $region16: #{tpu_custom_call.1} parent=1 // pred_region
      _
    $region17: #{tpu_custom_call.1} parent=1 // pred_fallthru
      _
    // Predicated region
    $region18: #{tpu_custom_call.1} parent=1 // pred_check
      _
    $region19: #{tpu_custom_call.1} parent=1 // pred_check_branch
      %55 = sbr.rel (0) target = $region21
    $region20: #{tpu_custom_call.1} parent=1 // pred_region
      _
    $region21: #{tpu_custom_call.1} parent=1 // pred_fallthru
      _
    // Predicated region
    $region22: #{tpu_custom_call.1} parent=1 // pred_check
      _
    $region23: #{tpu_custom_call.1} parent=1 // pred_check_branch
      %57 = sbr.rel (0) target = $region25
    $region24: #{tpu_custom_call.1} parent=1 // pred_region
      %59 = dma.done [#allocation5], 256
    $region25: #{tpu_custom_call.1} parent=1 // pred_fallthru
      _
    // Predicated region
    $region26: #{tpu_custom_call.1} parent=1 // pred_check
      _
    $region27: #{tpu_custom_call.1} parent=1 // pred_check_branch
      %61 = sbr.rel (0) target = $region29
    $region28: #{tpu_custom_call.1} parent=1 // pred_region
      %63 = dma.done [#allocation8], 512
    $region29: #{tpu_custom_call.1} parent=1 // pred_fallthru
      _
    // Predicated region
    $region30: #{tpu_custom_call.1} parent=1 // pred_check
      _
    $region31: #{tpu_custom_call.1} parent=1 // pred_check_branch
      %65 = sbr.rel (0) target = $region33
    $region32: #{tpu_custom_call.1} parent=1 // pred_region
      %67 = dma.done [#allocation8], 512
    $region33: #{tpu_custom_call.1} parent=1 // pred_fallthru
      _
    %p68 = scmp.eq.s32.totalorder 0, 0
    // Predicated region
    $region34: #{tpu_custom_call.1} parent=1 // pred_check
      %p69 = pneg %p68
    $region35: #{tpu_custom_call.1} parent=1 // pred_check_branch
      %71 = sbr.rel (%p69) target = $region37
    $region36: #{tpu_custom_call.1} parent=1 // pred_region
      %vm72 = vcmask 523264
      %73 = vst.msk [vmem:[#allocation2] sm:$0xff] %vm72, 0.0
      %74 = vst.msk [vmem:[#allocation2 + $0x8] sm:$0xff] %vm72, 0.0
      %75 = vst.msk [vmem:[#allocation3] sm:$0xff] %vm72, 0.0
      %76 = vst.msk [vmem:[#allocation3 + $0x8] sm:$0xff] %vm72, 0.0
    $region37: #{tpu_custom_call.1} parent=1 // pred_fallthru
      _
    %v77 = vld [vmem:[#allocation4] sm:$0xff]
    %v78 = vld [vmem:[#allocation4 + $0x8] sm:$0xff]
    %v79 = vld [vmem:[#allocation2] sm:$0xff]
    %v80 = vld [vmem:[#allocation2 + $0x8] sm:$0xff]
    %v81 = vld [vmem:[#allocation7] sm:$0xff]
    %v82 = vld [vmem:[#allocation7 + $0x8] sm:$0xff]
    %v83 = vld [vmem:[#allocation7 + $0x10] sm:$0xff]
    %v84 = vld [vmem:[#allocation7 + $0x18] sm:$0xff]
    %vm85 = vcmask 261120
    %v87 = vsel %vm85, %v77, 0
    %v90 = vsel %vm85, %v78, 0
    %92 = vmatpush.msra.mxu0 0.0
    %93 = vmatpush.msra.mxu0 0.0
    %94 = vmatpush.msra.mxu0 0.0
    %95 = vmatpush.msra.mxu0 0.0
    %96 = vmatpush.msra.mxu0 0.0
    %97 = vmatpush.msra.mxu0 0.0
    %98 = vmatpush.msra.mxu0 0.0
    %99 = vmatpush.msra.mxu0 0.0
    %100 = vmatpush.msra.mxu0 0.0
    %101 = vmatpush.msra.mxu0 0.0
    %102 = vmatpush.msra.mxu0 0.0
    %103 = vmatpush.msra.mxu0 0.0
    %104 = vmatpush.msra.mxu0 %v84
    %105 = vmatpush.msra.mxu0 %v83
    %106 = vmatpush.msra.mxu0 %v82
    %107 = vmatpush.msra.mxu0 %v81
    %108 = vmatmul.f32.gmra.mxu0 %v87
    %v109 = vpop.f32.mrf.mxu0
    %v110 = vadd.f32 0.0, %v109
    %111 = vmatmul.f32.gmra.mxu0 %v90
    %v112 = vpop.f32.mrf.mxu0
    %v113 = vadd.f32 0.0, %v112
    %114 = vdwg.mxu0
    %v115 = vadd.f32 %v79, %v110
    %v116 = vadd.f32 %v80, %v113
    %vm117 = vcmask 523264
    %118 = vst.msk [vmem:[#allocation2] sm:$0xff] %vm117, %v115
    %119 = vst.msk [vmem:[#allocation2 + $0x8] sm:$0xff] %vm117, %v116
    %v120 = vld [vmem:[#allocation3] sm:$0xff]
    %v121 = vld [vmem:[#allocation3 + $0x8] sm:$0xff]
    %v122 = vld [vmem:[#allocation9] sm:$0xff]
    %v123 = vld [vmem:[#allocation9 + $0x8] sm:$0xff]
    %v124 = vld [vmem:[#allocation9 + $0x10] sm:$0xff]
    %v125 = vld [vmem:[#allocation9 + $0x18] sm:$0xff]
    %126 = vmatpush.msra.mxu0 0.0
    %127 = vmatpush.msra.mxu0 0.0
    %128 = vmatpush.msra.mxu0 0.0
    %129 = vmatpush.msra.mxu0 0.0
    %130 = vmatpush.msra.mxu0 0.0
    %131 = vmatpush.msra.mxu0 0.0
    %132 = vmatpush.msra.mxu0 0.0
    %133 = vmatpush.msra.mxu0 0.0
    %134 = vmatpush.msra.mxu0 0.0
    %135 = vmatpush.msra.mxu0 0.0
    %136 = vmatpush.msra.mxu0 0.0
    %137 = vmatpush.msra.mxu0 0.0
    %138 = vmatpush.msra.mxu0 %v125
    %139 = vmatpush.msra.mxu0 %v124
    %140 = vmatpush.msra.mxu0 %v123
    %141 = vmatpush.msra.mxu0 %v122
    %142 = vmatmul.f32.gmra.mxu0 %v87
    %v143 = vpop.f32.mrf.mxu0
    %v144 = vadd.f32 0.0, %v143
    %145 = vmatmul.f32.gmra.mxu0 %v90
    %v146 = vpop.f32.mrf.mxu0
    %v147 = vadd.f32 0.0, %v146
    %148 = vdwg.mxu0
    %v149 = vadd.f32 %v120, %v144
    %v150 = vadd.f32 %v121, %v147
    %151 = vst.msk [vmem:[#allocation3] sm:$0xff] %vm117, %v149
    %152 = vst.msk [vmem:[#allocation3 + $0x8] sm:$0xff] %vm117, %v150
    // Predicated region
    $region38: #{tpu_custom_call.1} parent=1 // pred_check
      %p153 = pneg %p68
    $region39: #{tpu_custom_call.1} parent=1 // pred_check_branch
      %155 = sbr.rel (%p153) target = $region41
    $region40: #{tpu_custom_call.1} parent=1 // pred_region
      %v156 = vld [vmem:[#allocation2] sm:$0xff]
      %v157 = vld [vmem:[#allocation2 + $0x8] sm:$0xff]
      %v158 = vld [vmem:[%s3] sm:$0x1]
      %v160 = vperm.slane %v158, 0
      %v162 = vadd.f32 %v156, %v160
      %v163 = vadd.f32 %v157, %v160
      %v164 = vld [vmem:[#allocation3] sm:$0xff]
      %v165 = vld [vmem:[#allocation3 + $0x8] sm:$0xff]
      %v166 = vld [vmem:[%s4] sm:$0x1]
      %v168 = vperm.slane %v166, 0
      %v170 = vadd.f32 %v164, %v168
      %v171 = vadd.f32 %v165, %v168
      %v172 = vxor.u32 %v170, 2147483648
      %v173 = vxor.u32 %v171, 2147483648
      %v174 = vmul.f32 %v172, 1.442695
      %v175 = vpow.pop %v174
      %v176 = vmul.f32 %v173, 1.442695
      %v177 = vpow.pop %v176
      %v178 = vadd.f32 %v175, 1.0
      %v179 = vadd.f32 %v177, 1.0
      %v180 = vrcp.pop %v178
      %v181 = vmul.f32 %v178, %v180
      %v182 = vsub.f32 1.0, %v181
      %v183 = vmul.f32 %v180, %v182
      %v184 = vadd.f32 %v180, %v183
      %vm185 = vweird.f32 %v178
      %vm186 = vweird.f32 %v180
      %vm187 = vmor %vm185, %vm186
      %v188 = vsel %vm187, %v180, %v184
      %v189 = vand.u32 2147483647, %v178
      %vm190 = vcmp.eq.f32.partialorder %v189, 8.507059e+37
      %v191 = vand.u32 %v178, 2147483648
      %v192 = vor.u32 1.1754944e-38, %v191
      %v193 = vsel %vm190, %v192, %v188
      %v194 = vmul.f32 1.0, %v193
      %v195 = vrcp.pop %v179
      %v196 = vmul.f32 %v179, %v195
      %v197 = vsub.f32 1.0, %v196
      %v198 = vmul.f32 %v195, %v197
      %v199 = vadd.f32 %v195, %v198
      %vm200 = vweird.f32 %v179
      %vm201 = vweird.f32 %v195
      %vm202 = vmor %vm200, %vm201
      %v203 = vsel %vm202, %v195, %v199
      %v204 = vand.u32 2147483647, %v179
      %vm205 = vcmp.eq.f32.partialorder %v204, 8.507059e+37
      %v206 = vand.u32 %v179, 2147483648
      %v207 = vor.u32 1.1754944e-38, %v206
      %v208 = vsel %vm205, %v207, %v203
      %v209 = vmul.f32 1.0, %v208
      %v210 = vmul.f32 %v170, %v194
      %v211 = vmul.f32 %v171, %v209
      %v212 = vmul.f32 %v162, %v210
      %v213 = vmul.f32 %v163, %v211
      %214 = vst.msk [vmem:[#allocation10] sm:$0xff] %vm117, %v212
      %215 = vst.msk [vmem:[#allocation10 + $0x8] sm:$0xff] %vm117, %v213
    $region41: #{tpu_custom_call.1} parent=1 // pred_fallthru
      _
    // Predicated region
    $region42: #{tpu_custom_call.1} parent=1 // pred_check
      _
    $region43: #{tpu_custom_call.1} parent=1 // pred_check_branch
      %217 = sbr.rel (0) target = $region45
    $region44: #{tpu_custom_call.1} parent=1 // pred_region
      %219 = vsyncadd [#allocation6], 0
      %s220 = sshll.u32 [#allocation10], 4
      %s221 = int_to_ptr.vmem [resolvable:$true] %s220
      %s222 = sshll.u32 %s5, 4
      %s223 = int_to_ptr.hbm [resolvable:$true] %s222
      %228 = dma.vmem_to_hbm [thread:$0]  %s221, 256, %s223, [#allocation6], 128, 128, 8
    $region45: #{tpu_custom_call.1} parent=1 // pred_fallthru
      _
    // Predicated region
    $region46: #{tpu_custom_call.1} parent=1 // pred_check
      _
    $region47: #{tpu_custom_call.1} parent=1 // pred_check_branch
      %230 = sbr.rel (0) target = $region49
    $region48: #{tpu_custom_call.1} parent=1 // pred_region
      %232 = dma.done [#allocation6], 256
    $region49: #{tpu_custom_call.1} parent=1 // pred_fallthru
      _
    %233 = vsyncpa [#allocation5], 1
    %234 = vsyncpa [#allocation8], 1
    %235 = vsyncpa [#allocation6], 1

</llo_original>
